<compile_context>
chip_gen: v5e
topology: v5e:2x2
jax: 0.10.0
libtpu: 0.0.40
codegen_flags: <defaults>
</compile_context>

<pallas_src>
from functools import partial

import jax
import jax.numpy as jnp
from jax.experimental import pallas as pl
from jax.experimental.pallas import tpu as pltpu


def _round_up(x, m):
    return ((x + m - 1) // m) * m


def _pick_tile(n, align, max_tile=512):
    """Pick (tile, padded_dim) with tile a multiple of `align`, minimizing
    padded bytes.  If the aligned dim fits in one tile, use it whole."""
    base = _round_up(n, align)
    if base <= max_tile:
        return base, base
    best_t, best_p = None, None
    for t in (512, 256, 128):          # all multiples of 8 and of 128
        if t > max_tile:
            continue
        p = _round_up(n, t)
        if best_p is None or p < best_p:
            best_t, best_p = t, p
    return best_t, best_p


def _pad_cast(x, shape, dtype):
    """Cast + zero-pad only when needed (avoid a gratuitous O(N^2) copy)."""
    x = x.astype(dtype)
    if tuple(x.shape) != tuple(shape):
        x = jnp.pad(x, [(0, s - d) for s, d in zip(shape, x.shape)])
    return x


def gcn_kernel(*refs, post_project, seq_resident, tk):
    """One (batch b, row-tile i, k-tile k) grid step.

    feat_ref: resident (K_p, F_feat) slab or streamed (TK, F_feat) slab
    adj_ref:  (TM, TK) adjacency tile (compute dtype)
    w_ref:    (Fin_p, Fout_p) weight (only present when post_project)
    b_ref:    (1, Fout_p) f32 bias
    a_ref:    (1,) f32 PReLU slope in SMEM
    out_ref:  (TM, Fout_p) output tile (written on last k)
    acc_ref:  (TM, F_feat) f32 VMEM accumulator over the K axis
    """
    if post_project:
        feat_ref, adj_ref, w_ref, b_ref, a_ref, out_ref, acc_ref = refs
    else:
        feat_ref, adj_ref, b_ref, a_ref, out_ref, acc_ref = refs
        w_ref = None

    k = pl.program_id(2)

    if seq_resident:
        start = pl.multiple_of(k * tk, tk)
        feat = feat_ref[pl.ds(start, tk), :]
    else:
        feat = feat_ref[...]

    prod = jnp.dot(adj_ref[...], feat, preferred_element_type=jnp.float32)

    @pl.when(k == 0)
    def _first():                       # direct store -> no zero-init pass
        acc_ref[...] = prod

    @pl.when(k > 0)
    def _accum():
        acc_ref[...] += prod

    @pl.when(k == pl.num_programs(2) - 1)
    def _finalize():
        acc = acc_ref[...]
        if post_project:
            # project by W only once per output tile
            acc = jnp.dot(acc.astype(w_ref.dtype), w_ref[...],
                          preferred_element_type=jnp.float32)
        acc = acc + b_ref[...]                      # (TM,Fout_p) + (1,Fout_p)
        alpha = a_ref[0]                            # scalar from SMEM
        out_ref[...] = jnp.where(acc >= 0.0, acc, alpha * acc).astype(
            out_ref.dtype)


def gcn_forward(seq, adj, weight_t, bias, alpha, *,
                compute_dtype=jnp.bfloat16, out_dtype=None, tile_cap=512):
    """seq: (B, N, in_ft), adj: (B, N, N), weight_t: (in_ft, out_ft),
    bias: (out_ft,), alpha: scalar PReLU slope.

    Matmul operands run in `compute_dtype` (default bf16) with f32 MXU
    accumulation; bias/PReLU epilogue is f32; output dtype defaults to the
    input dtype.
    """
    B, N, in_ft = seq.shape
    out_ft = weight_t.shape[1]
    cd = jnp.dtype(compute_dtype)
    od = jnp.dtype(out_dtype) if out_dtype is not None else jnp.dtype(seq.dtype)

    Fin_p = _round_up(in_ft, 128)
    Fout_p = _round_up(out_ft, 128)
    post_project = in_ft <= out_ft          # (adj @ seq) @ W  vs  adj @ (seq @ W)
    F_feat = Fin_p if post_project else Fout_p

    # Rows (sublane dim) pad to a multiple of 8, contraction/lane dim to 128,
    # with the biggest tile (<= tile_cap) that keeps padding waste minimal.
    # Note for v7x: B * (M_p // TM) should be >= 2 to feed both TensorCores.
    TM, M_p = _pick_tile(N, 8, tile_cap)
    TK, K_p = _pick_tile(N, 128, tile_cap)

    # Node features fed to the adjacency matmul.
    if post_project:
        feat = seq
    else:
        # Hoist the Linear projection out of the (i, k) loop: compute it once.
        feat = jnp.einsum("bni,io->bno", seq.astype(cd), weight_t.astype(cd),
                          preferred_element_type=jnp.float32)
    feat_p = _pad_cast(feat, (B, K_p, F_feat), cd)
    adj_p = _pad_cast(adj, (B, M_p, K_p), cd)
    b_p = _pad_cast(bias.reshape(1, out_ft), (1, Fout_p), jnp.float32)
    alpha_s = jnp.asarray(alpha, jnp.float32).reshape(1)

    # Keep the whole per-batch feature slab resident in VMEM when small enough.
    seq_resident = K_p * F_feat * cd.itemsize <= (4 << 20)

    grid = (B, M_p // TM, K_p // TK)

    if seq_resident:
        feat_spec = pl.BlockSpec((pl.Squeezed(), K_p, F_feat),
                                 lambda b, i, k: (b, 0, 0))
    else:
        feat_spec = pl.BlockSpec((pl.Squeezed(), TK, F_feat),
                                 lambda b, i, k: (b, k, 0))

    in_specs = [
        feat_spec,
        pl.BlockSpec((pl.Squeezed(), TM, TK), lambda b, i, k: (b, i, k)),
    ]
    inputs = [feat_p, adj_p]
    if post_project:
        w_p = _pad_cast(weight_t, (Fin_p, Fout_p), cd)
        in_specs.append(pl.BlockSpec((Fin_p, Fout_p), lambda b, i, k: (0, 0)))
        inputs.append(w_p)
    in_specs += [
        pl.BlockSpec((1, Fout_p), lambda b, i, k: (0, 0)),
        pl.BlockSpec(memory_space=pltpu.MemorySpace.SMEM),   # PReLU slope
    ]
    inputs += [b_p, alpha_s]

    # VMEM budget from the actual tile sizes (+headroom), capped well under the
    # 64 MiB v7x per-core ceiling.
    feat_rows = K_p if seq_resident else TK
    est = (2 * TM * TK * cd.itemsize                      # adj (double buffer)
           + 2 * feat_rows * F_feat * cd.itemsize         # features
           + (2 * Fin_p * Fout_p * cd.itemsize if post_project else 0)
           + 2 * Fout_p * 4                               # bias
           + 2 * TM * Fout_p * od.itemsize                # output tile
           + TM * F_feat * 4)                             # accumulator
    vmem_limit = int(min(max(2 * est, 16 << 20), 48 << 20))

    flops = 2 * B * M_p * K_p * F_feat
    if post_project:
        flops += 2 * B * M_p * Fin_p * Fout_p
    bytes_accessed = (B * M_p * K_p * cd.itemsize
                      + B * K_p * F_feat * cd.itemsize
                      * (1 if seq_resident else (M_p // TM))
                      + B * M_p * Fout_p * od.itemsize
                      + (Fin_p * Fout_p * cd.itemsize if post_project else 0)
                      + Fout_p * 4)

    out_p = pl.pallas_call(
        partial(gcn_kernel, post_project=post_project,
                seq_resident=seq_resident, tk=TK),
        out_shape=jax.ShapeDtypeStruct((B, M_p, Fout_p), od),
        grid=grid,
        in_specs=in_specs,
        out_specs=pl.BlockSpec((pl.Squeezed(), TM, Fout_p),
                               lambda b, i, k: (b, i, 0)),
        scratch_shapes=[pltpu.VMEM((TM, F_feat), jnp.float32)],
        compiler_params=pltpu.CompilerParams(
            dimension_semantics=("parallel", "parallel", "arbitrary"),
            vmem_limit_bytes=vmem_limit,
        ),
        cost_estimate=pl.CostEstimate(flops=int(flops), transcendentals=0,
                                      bytes_accessed=int(bytes_accessed)),
    )(*inputs)

    return out_p[:, :N, :out_ft]


def reference_gcn(seq, adj, weight_t, bias, alpha, *,
                  compute_dtype=jnp.bfloat16):
    """Pure-JAX reference mirroring the kernel's dtype/associativity choices
    (narrow operands, f32 accumulation) for a tight comparison."""
    in_ft = seq.shape[-1]
    out_ft = weight_t.shape[-1]
    cd = compute_dtype
    seq_c = seq.astype(cd)
    adj_c = adj.astype(cd)
    w_c = weight_t.astype(cd)
    if in_ft <= out_ft:
        agg = jnp.einsum("bnm,bmi->bni", adj_c, seq_c,
                         preferred_element_type=jnp.float32)
        out = jnp.einsum("bni,io->bno", agg.astype(cd), w_c,
                         preferred_element_type=jnp.float32)
    else:
        fts = jnp.einsum("bni,io->bno", seq_c, w_c,
                         preferred_element_type=jnp.float32)
        out = jnp.einsum("bnm,bmo->bno", adj_c, fts.astype(cd),
                         preferred_element_type=jnp.float32)
    out = out + bias.astype(jnp.float32)
    return jnp.where(out >= 0, out, jnp.float32(alpha) * out)


if __name__ == "__main__":
    key = jax.random.PRNGKey(0)

    def make_case(case_key, B, N, in_ft, out_ft):
        k_seq, k_adj, k_w = jax.random.split(case_key, 3)
        seq = jax.random.normal(k_seq, (B, N, in_ft), dtype=jnp.float32)
        adj = jax.random.uniform(k_adj, (B, N, N), dtype=jnp.float32)
        # nn.Linear(in_ft, out_ft, bias=False) + xavier_uniform_; torch weight
        # is (out_ft, in_ft) -> we keep its transpose (in_ft, out_ft).
        bound = (6.0 / (in_ft + out_ft)) ** 0.5
        weight_t = jax.random.uniform(k_w, (in_ft, out_ft), minval=-bound,
                                      maxval=bound, dtype=jnp.float32)
        bias = jnp.zeros((out_ft,), dtype=jnp.float32)   # bias.data.fill_(0.)
        return seq, adj, weight_t, bias

    alpha = 0.25     # nn.PReLU() default slope
    cases = [
        # (B, N, in_ft, out_ft, tile_cap)
        (2, 16, 8, 32, 512),    # post-project path (in_ft <= out_ft)
        (1, 40, 64, 16, 512),   # pre-project path (projection hoisted to XLA)
        (1, 300, 8, 32, 128),   # multi row-tile / multi K-tile accumulation
    ]
    keys = jax.random.split(key, len(cases))
    for case_key, (B, N, in_ft, out_ft, cap) in zip(keys, cases):
        seq, adj, weight_t, bias = make_case(case_key, B, N, in_ft, out_ft)

        out = gcn_forward(seq, adj, weight_t, bias, alpha, tile_cap=cap)
        jax.block_until_ready(out)
        assert out.shape == (B, N, out_ft)

        # Tight check vs a reference mirroring the kernel's bf16/f32 choices.
        ref_bf16 = reference_gcn(seq, adj, weight_t, bias, alpha,
                                 compute_dtype=jnp.bfloat16)
        assert jnp.allclose(out, ref_bf16, atol=5e-2, rtol=1e-2), (
            (B, N, in_ft, out_ft), float(jnp.max(jnp.abs(out - ref_bf16))))

        # Loose sanity check vs exact f32 math (bf16 rounding tolerance).
        ref_f32 = reference_gcn(seq, adj, weight_t, bias, alpha,
                                compute_dtype=jnp.float32)
        assert jnp.allclose(out, ref_f32, atol=0.5, rtol=0.1), (
            (B, N, in_ft, out_ft), float(jnp.max(jnp.abs(out - ref_f32))))

    print("KERNEL_OK")
</pallas_src>

<mosaic_0001>
module attributes {stable_mosaic.version = 11 : i64} {
  func.func @gcn_kernel(%arg0: i32, %arg1: i32, %arg2: i32, %arg3: memref<1x128x128xbf16, #tpu.memory_space<vmem>>, %arg4: memref<1x16x128xbf16, #tpu.memory_space<vmem>>, %arg5: memref<128x128xbf16, #tpu.memory_space<vmem>>, %arg6: memref<1x128xf32, #tpu.memory_space<vmem>>, %arg7: memref<1xf32, #tpu.memory_space<smem>>, %arg8: memref<1x16x128xf32, #tpu.memory_space<vmem>>, %arg9: memref<16x128xf32, #tpu.memory_space<vmem>>) attributes {dimension_semantics = [#tpu.dimension_semantics<parallel>, #tpu.dimension_semantics<parallel>, #tpu.dimension_semantics<arbitrary>], iteration_bounds = array<i64: 2, 1, 1>, scalar_prefetch = 0 : i64, scratch_operands = 1 : i64, tpu.core_type = #tpu.core_type<tc>, window_params = [{transform_indices = @transform_0, window_bounds = array<i64: 1, 128, 128>}, {transform_indices = @transform_1, window_bounds = array<i64: 1, 16, 128>}, {pipeline_mode = #tpu.pipeline_mode<synchronous>, transform_indices = @transform_2, window_bounds = array<i64: 128, 128>}, {pipeline_mode = #tpu.pipeline_mode<synchronous>, transform_indices = @transform_3, window_bounds = array<i64: 1, 128>}, {transform_indices = @transform_4, window_bounds = array<i64: 1>}, {transform_indices = @transform_5, window_bounds = array<i64: 1, 16, 128>}]} {
    %c128_i32 = arith.constant 128 : i32
    %0 = arith.muli %arg2, %c128_i32 : i32
    %1 = tpu.assume_multiple %0, 128 : i32
    %c0 = arith.constant 0 : index
    %2 = arith.index_cast %1 : i32 to index
    %c0_0 = arith.constant 0 : index
    %3 = vector.load %arg3[%c0, %2, %c0_0] : memref<1x128x128xbf16, #tpu.memory_space<vmem>>, vector<1x128x128xbf16>
    %4 = vector.shape_cast %3 : vector<1x128x128xbf16> to vector<128x128xbf16>
    %c0_1 = arith.constant 0 : index
    %c0_2 = arith.constant 0 : index
    %c0_3 = arith.constant 0 : index
    %5 = vector.load %arg4[%c0_1, %c0_2, %c0_3] : memref<1x16x128xbf16, #tpu.memory_space<vmem>>, vector<1x16x128xbf16>
    %6 = vector.shape_cast %5 : vector<1x16x128xbf16> to vector<16x128xbf16>
    %cst = arith.constant dense<0.000000e+00> : vector<16x128xf32>
    %7 = tpu.matmul %6, %4, %cst {dimension_numbers = #tpu.dot_dimension_numbers<[1], [0], [0], [1], [0, 0, 1, 1], [], []>} : vector<16x128xbf16>, vector<128x128xbf16>, vector<16x128xf32> -> vector<16x128xf32>
    %c0_i32 = arith.constant 0 : i32
    %8 = arith.cmpi eq, %arg2, %c0_i32 : i32
    %9 = arith.extui %8 : i1 to i32
    %c0_i32_4 = arith.constant 0 : i32
    %10 = arith.cmpi ne, %9, %c0_i32_4 : i32
    scf.if %10 {
      %c0_9 = arith.constant 0 : index
      %c0_10 = arith.constant 0 : index
      %17 = vector.load %arg9[%c0_9, %c0_10] : memref<16x128xf32, #tpu.memory_space<vmem>>, vector<16x128xf32>
      tpu.vector_store %arg9[%c0_9, %c0_10], %7 {strides = array<i32>} : memref<16x128xf32, #tpu.memory_space<vmem>>, vector<16x128xf32>,
    } else {
    }
    %c0_i32_5 = arith.constant 0 : i32
    %11 = arith.cmpi sgt, %arg2, %c0_i32_5 : i32
    %12 = arith.extui %11 : i1 to i32
    %c0_i32_6 = arith.constant 0 : i32
    %13 = arith.cmpi ne, %12, %c0_i32_6 : i32
    scf.if %13 {
      %c0_9 = arith.constant 0 : index
      %c0_10 = arith.constant 0 : index
      %17 = vector.load %arg9[%c0_9, %c0_10] : memref<16x128xf32, #tpu.memory_space<vmem>>, vector<16x128xf32>
      %18 = arith.addf %17, %7 : vector<16x128xf32>
      %c0_11 = arith.constant 0 : index
      %c0_12 = arith.constant 0 : index
      %19 = vector.load %arg9[%c0_11, %c0_12] : memref<16x128xf32, #tpu.memory_space<vmem>>, vector<16x128xf32>
      tpu.vector_store %arg9[%c0_11, %c0_12], %18 {strides = array<i32>} : memref<16x128xf32, #tpu.memory_space<vmem>>, vector<16x128xf32>,
    } else {
    }
    %c0_i32_7 = arith.constant 0 : i32
    %14 = arith.cmpi eq, %arg2, %c0_i32_7 : i32
    %15 = arith.extui %14 : i1 to i32
    %c0_i32_8 = arith.constant 0 : i32
    %16 = arith.cmpi ne, %15, %c0_i32_8 : i32
    scf.if %16 {
      %c0_9 = arith.constant 0 : index
      %c0_10 = arith.constant 0 : index
      %17 = vector.load %arg9[%c0_9, %c0_10] : memref<16x128xf32, #tpu.memory_space<vmem>>, vector<16x128xf32>
      %18 = arith.truncf %17 : vector<16x128xf32> to vector<16x128xbf16>
      %c0_11 = arith.constant 0 : index
      %c0_12 = arith.constant 0 : index
      %19 = vector.load %arg5[%c0_11, %c0_12] : memref<128x128xbf16, #tpu.memory_space<vmem>>, vector<128x128xbf16>
      %cst_13 = arith.constant dense<0.000000e+00> : vector<16x128xf32>
      %20 = tpu.matmul %18, %19, %cst_13 {dimension_numbers = #tpu.dot_dimension_numbers<[1], [0], [0], [1], [0, 0, 1, 1], [], []>} : vector<16x128xbf16>, vector<128x128xbf16>, vector<16x128xf32> -> vector<16x128xf32>
      %c0_14 = arith.constant 0 : index
      %c0_15 = arith.constant 0 : index
      %21 = vector.load %arg6[%c0_14, %c0_15] : memref<1x128xf32, #tpu.memory_space<vmem>>, vector<1x128xf32>
      %22 = vector.broadcast %21 : vector<1x128xf32> to vector<16x128xf32>
      %23 = arith.addf %20, %22 : vector<16x128xf32>
      %c0_16 = arith.constant 0 : index
      %24 = memref.load %arg7[%c0_16] : memref<1xf32, #tpu.memory_space<smem>>
      %cst_17 = arith.constant 0.000000e+00 : f32
      %25 = vector.broadcast %cst_17 : f32 to vector<16x128xf32>
      %26 = arith.cmpf oge, %23, %25 : vector<16x128xf32>
      %27 = vector.broadcast %24 : f32 to vector<16x128xf32>
      %28 = arith.mulf %27, %23 : vector<16x128xf32>
      %29 = arith.select %26, %23, %28 : vector<16x128xi1>, vector<16x128xf32>
      %c0_18 = arith.constant 0 : index
      %c0_19 = arith.constant 0 : index
      %c0_20 = arith.constant 0 : index
      %30 = vector.load %arg8[%c0_18, %c0_19, %c0_20] : memref<1x16x128xf32, #tpu.memory_space<vmem>>, vector<1x16x128xf32>
      %31 = vector.shape_cast %30 : vector<1x16x128xf32> to vector<16x128xf32>
      %32 = vector.shape_cast %29 : vector<16x128xf32> to vector<1x16x128xf32>
      tpu.vector_store %arg8[%c0_18, %c0_19, %c0_20], %32 {strides = array<i32>} : memref<1x16x128xf32, #tpu.memory_space<vmem>>, vector<1x16x128xf32>,
    } else {
    }
    return
  }
  func.func @transform_0(%arg0: i32, %arg1: i32, %arg2: i32) -> (i32, i32, i32) {
    %c0_i32 = arith.constant 0 : i32
    %c0_i32_0 = arith.constant 0 : i32
    %c0_i32_1 = arith.constant 0 : i32
    return %arg0, %c0_i32, %c0_i32_0 : i32, i32, i32
  }
  func.func @transform_1(%arg0: i32, %arg1: i32, %arg2: i32) -> (i32, i32, i32) {
    %c0_i32 = arith.constant 0 : i32
    return %arg0, %arg1, %arg2 : i32, i32, i32
  }
  func.func @transform_2(%arg0: i32, %arg1: i32, %arg2: i32) -> (i32, i32) {
    %c0_i32 = arith.constant 0 : i32
    %c0_i32_0 = arith.constant 0 : i32
    %c0_i32_1 = arith.constant 0 : i32
    return %c0_i32, %c0_i32_0 : i32, i32
  }
  func.func @transform_3(%arg0: i32, %arg1: i32, %arg2: i32) -> (i32, i32) {
    %c0_i32 = arith.constant 0 : i32
    %c0_i32_0 = arith.constant 0 : i32
    %c0_i32_1 = arith.constant 0 : i32
    return %c0_i32, %c0_i32_0 : i32, i32
  }
  func.func @transform_4(%arg0: i32, %arg1: i32, %arg2: i32) -> i32 {
    %c0_i32 = arith.constant 0 : i32
    %c0_i32_0 = arith.constant 0 : i32
    return %c0_i32 : i32
  }
  func.func @transform_5(%arg0: i32, %arg1: i32, %arg2: i32) -> (i32, i32, i32) {
    %c0_i32 = arith.constant 0 : i32
    %c0_i32_0 = arith.constant 0 : i32
    return %arg0, %arg1, %c0_i32 : i32, i32, i32
  }
}

</mosaic_0001>

<llo_original>
// kernel: tpu_custom_call.1
$region0: #{tpu_custom_call.1}
  #allocation0 [shape = 'u32[]', space=smem, size = 0x4, offset = 0x4, fixed_abs, tag = 'smem constant byte address 0x4 - core index']
  #allocation1 [shape = 'u32[72,128]{1,0:T(1,128)}', space=vmem, size = 0x9000, scoped, tag = 'internal scratch']
  #allocation2 [shape = 'f32[16,128]{1,0:T(8,128)}', space=vmem, size = 0x2000, scoped, tag = 'scratch operand']
  #allocation3 [shape = 'f32[1]{0:T(128)S(6)}', space=smem, size = 0x200, scoped, tag = 'scoped memory for tpu_custom_call.1']
  %s0 = inlined_call_operand.hbm [shape: bf16[2,128,128], index: 0, kind: input, shape index: {}]
  %s1 = inlined_call_operand.hbm [shape: bf16[2,16,128], index: 1, kind: input, shape index: {}]
  %s2 = inlined_call_operand.hbm [shape: bf16[128,128], index: 2, kind: input, shape index: {}]
  %s3 = inlined_call_operand.vmem [shape: f32[1,128], index: 3, kind: input, shape index: {}]
  %s4 = inlined_call_operand.<no memory space> [shape: f32[1], index: 4, kind: input, shape index: {}]
  %s5 = inlined_call_operand.hbm [shape: f32[2,16,128], index: 5, kind: output, shape index: {}]
  %s6 = sld [smem:[#allocation0]]
  $region77: #{tpu_custom_call.1} parent=0
    _
  %s8 = ssub.s32 1, %s6
  %s9 = scalar_select 0, %s8, %s6
  %10 = sst [smem:[#allocation3]] %s4
  $region1: #{tpu_custom_call.1} parent=0
    #allocation4 [shape = 'u8[65536]{0}', space=vmem, size = 0x10000, scoped, tag = 'input window, operand 0']
    #allocation5 [shape = 's32[2]{0}', space=sflag, size = 0x8, scoped, tag = 'scoped memory for tpu_custom_call.1']
    #allocation6 [shape = 's32[2]{0}', space=sflag, size = 0x8, scoped, tag = 'scoped memory for tpu_custom_call.1']
    #allocation7 [shape = 'u8[8192]{0}', space=vmem, size = 0x2000, scoped, tag = 'input window, operand 1']
    #allocation8 [shape = 's32[2]{0}', space=sflag, size = 0x8, scoped, tag = 'scoped memory for tpu_custom_call.1']
    #allocation9 [shape = 'u8[32768]{0}', space=vmem, size = 0x8000, scoped, tag = 'input window, operand 2, single buffered']
    #allocation10 [shape = 'u8[16384]{0}', space=vmem, size = 0x4000, scoped, tag = 'output window, operand 0']
    %11 = vsyncpa [#allocation5], 0
    %s12 = scalar_lea.sflag [#allocation5], 1
    %13 = vsyncpa %s12, 0
    %14 = vsyncpa [#allocation8], 0
    %s15 = scalar_lea.sflag [#allocation8], 1
    %16 = vsyncpa %s15, 0
    %17 = vsyncpa [#allocation6], 0
    %s18 = scalar_lea.sflag [#allocation6], 1
    %19 = vsyncpa %s18, 0
    loop: start=0, step=1, limit=4
    $region2: #{tpu_custom_call.1} parent=1 // loop_pre_header
      _
    $region3: #{tpu_custom_call.1} parent=1 // loop_header
      %s21 = sphi 0, %s25
      %p22 = scmp.ge.s32.totalorder %s21, 4
      %s28 = sphi 0, %s47
      %s29 = sphi 0, %s43
      %s30 = sphi 0, %s39
      %s31 = sphi 0, %s28
      %s32 = sphi 0, %s29
      %s33 = sphi 0, %s30
      %s34 = sphi 0, %s31
      %s35 = sphi 0, %s32
      %s36 = sphi 0, %s33
      %s50 = sphi 0, %s52
      %s53 = sphi 0, %s50
      %s54 = sphi 0, %s53
      %s70 = sphi 0, %s54
      %s80 = sphi 0, %s82
      %s83 = sphi 0, %s80
      %s84 = sphi 0, %s83
      %s100 = sphi 0, %s84
      %s104 = sphi 0, %s104
      %s106 = sphi 0, %s104
      %s107 = sphi 0, %s106
      %s121 = sphi 0, %s107
      %s125 = sphi 0, %s125
      %s127 = sphi 0, %s125
      %s128 = sphi 0, %s127
      %s142 = sphi 0, %s128
      %s146 = sphi 0, %s146
      %s148 = sphi 0, %s146
      %s149 = sphi 0, %s148
      %s163 = sphi 0, %s149
      %s171 = sphi 0, %s173
      %s174 = sphi 0, %s171
      %s175 = sphi 0, %s174
      %s191 = sphi 0, %s175
    $region4: #{tpu_custom_call.1} parent=1 // loop_header_branch
      %24 = sbr.rel (%p22) target = $region8
    $region5: #{tpu_custom_call.1} parent=1 // loop_body
      %s26 = ssub.s32 %s21, 1
      %s27 = ssub.s32 %s21, 2
      %s37 = sadd.s32 1, %s30
      %p38 = scmp.ge.s32.totalorder %s37, 1
      %s39 = scalar_select %p38, 0, %s37
      %s40 = sadd.s32 1, %s29
      %s41 = scalar_select %p38, %s40, %s29
      %p42 = scmp.ge.s32.totalorder %s41, 1
      %s43 = scalar_select %p42, 0, %s41
      %s44 = sadd.s32 1, %s28
      %s45 = scalar_select %p42, %s44, %s28
      %p46 = scmp.ge.s32.totalorder %s45, 2
      %s47 = scalar_select %p46, 0, %s45
      %s48 = ssub.s32 %s28, %s47
      %p49 = scmp.eq.s32.totalorder %s48, 0
      %s51 = sadd.s32 %s50, 1
      %s52 = scalar_select %p49, %s50, %s51
      %p55 = pneg %p49
      %p56 = scmp.eq.s32.totalorder %s21, 1
      %p57 = por %p55, %p56
      %p58 = scmp.ne.s32.totalorder %s50, %s53
      %p59 = scmp.eq.s32.totalorder %s21, 0
      %p60 = por %p58, %p59
      %p61 = scmp.ne.s32.totalorder %s50, %s53
      %p62 = scmp.eq.s32.totalorder %s26, 1
      %p63 = por %p61, %p62
      %p64 = scmp.ne.s32.totalorder %s53, %s54
      %p65 = scmp.eq.s32.totalorder %s26, 0
      %p66 = por %p64, %p65
      %p67 = scmp.ne.s32.totalorder %s53, %s54
      %p68 = scmp.eq.s32.totalorder %s27, 1
      %p69 = por %p67, %p68
      %p71 = scmp.ne.s32.totalorder %s54, %s70
      %p72 = scmp.eq.s32.totalorder %s27, 0
      %p73 = por %p71, %p72
      %s74 = ssub.s32 %s28, %s47
      %s75 = ssub.s32 %s29, %s43
      %s76 = sor.u32 %s74, %s75
      %s77 = ssub.s32 %s30, %s39
      %s78 = sor.u32 %s76, %s77
      %p79 = scmp.eq.s32.totalorder %s78, 0
      %s81 = sadd.s32 %s80, 1
      %s82 = scalar_select %p79, %s80, %s81
      %p85 = pneg %p79
      %p86 = scmp.eq.s32.totalorder %s21, 1
      %p87 = por %p85, %p86
      %p88 = scmp.ne.s32.totalorder %s80, %s83
      %p89 = scmp.eq.s32.totalorder %s21, 0
      %p90 = por %p88, %p89
      %p91 = scmp.ne.s32.totalorder %s80, %s83
      %p92 = scmp.eq.s32.totalorder %s26, 1
      %p93 = por %p91, %p92
      %p94 = scmp.ne.s32.totalorder %s83, %s84
      %p95 = scmp.eq.s32.totalorder %s26, 0
      %p96 = por %p94, %p95
      %p97 = scmp.ne.s32.totalorder %s83, %s84
      %p98 = scmp.eq.s32.totalorder %s27, 1
      %p99 = por %p97, %p98
      %p101 = scmp.ne.s32.totalorder %s84, %s100
      %p102 = scmp.eq.s32.totalorder %s27, 0
      %p103 = por %p101, %p102
      %s105 = sadd.s32 %s104, 1
      %p108 = scmp.eq.s32.totalorder %s21, 1
      %p109 = scmp.ne.s32.totalorder %s104, %s106
      %p110 = scmp.eq.s32.totalorder %s21, 0
      %p111 = por %p109, %p110
      %p112 = scmp.ne.s32.totalorder %s104, %s106
      %p113 = scmp.eq.s32.totalorder %s26, 1
      %p114 = por %p112, %p113
      %p115 = scmp.ne.s32.totalorder %s106, %s107
      %p116 = scmp.eq.s32.totalorder %s26, 0
      %p117 = por %p115, %p116
      %p118 = scmp.ne.s32.totalorder %s106, %s107
      %p119 = scmp.eq.s32.totalorder %s27, 1
      %p120 = por %p118, %p119
      %p122 = scmp.ne.s32.totalorder %s107, %s121
      %p123 = scmp.eq.s32.totalorder %s27, 0
      %p124 = por %p122, %p123
      %s126 = sadd.s32 %s125, 1
      %p129 = scmp.eq.s32.totalorder %s21, 1
      %p130 = scmp.ne.s32.totalorder %s125, %s127
      %p131 = scmp.eq.s32.totalorder %s21, 0
      %p132 = por %p130, %p131
      %p133 = scmp.ne.s32.totalorder %s125, %s127
      %p134 = scmp.eq.s32.totalorder %s26, 1
      %p135 = por %p133, %p134
      %p136 = scmp.ne.s32.totalorder %s127, %s128
      %p137 = scmp.eq.s32.totalorder %s26, 0
      %p138 = por %p136, %p137
      %p139 = scmp.ne.s32.totalorder %s127, %s128
      %p140 = scmp.eq.s32.totalorder %s27, 1
      %p141 = por %p139, %p140
      %p143 = scmp.ne.s32.totalorder %s128, %s142
      %p144 = scmp.eq.s32.totalorder %s27, 0
      %p145 = por %p143, %p144
      %s147 = sadd.s32 %s146, 1
      %p150 = scmp.eq.s32.totalorder %s21, 1
      %p151 = scmp.ne.s32.totalorder %s146, %s148
      %p152 = scmp.eq.s32.totalorder %s21, 0
      %p153 = por %p151, %p152
      %p154 = scmp.ne.s32.totalorder %s146, %s148
      %p155 = scmp.eq.s32.totalorder %s26, 1
      %p156 = por %p154, %p155
      %p157 = scmp.ne.s32.totalorder %s148, %s149
      %p158 = scmp.eq.s32.totalorder %s26, 0
      %p159 = por %p157, %p158
      %p160 = scmp.ne.s32.totalorder %s148, %s149
      %p161 = scmp.eq.s32.totalorder %s27, 1
      %p162 = por %p160, %p161
      %p164 = scmp.ne.s32.totalorder %s149, %s163
      %p165 = scmp.eq.s32.totalorder %s27, 0
      %p166 = por %p164, %p165
      %s167 = ssub.s32 %s28, %s47
      %s168 = ssub.s32 %s29, %s43
      %s169 = sor.u32 %s167, %s168
      %p170 = scmp.eq.s32.totalorder %s169, 0
      %s172 = sadd.s32 %s171, 1
      %s173 = scalar_select %p170, %s171, %s172
      %p176 = pneg %p170
      %p177 = scmp.eq.s32.totalorder %s21, 1
      %p178 = por %p176, %p177
      %p179 = scmp.ne.s32.totalorder %s171, %s174
      %p180 = scmp.eq.s32.totalorder %s21, 0
      %p181 = por %p179, %p180
      %p182 = scmp.ne.s32.totalorder %s171, %s174
      %p183 = scmp.eq.s32.totalorder %s26, 1
      %p184 = por %p182, %p183
      %p185 = scmp.ne.s32.totalorder %s174, %s175
      %p186 = scmp.eq.s32.totalorder %s26, 0
      %p187 = por %p185, %p186
      %p188 = scmp.ne.s32.totalorder %s174, %s175
      %p189 = scmp.eq.s32.totalorder %s27, 1
      %p190 = por %p188, %p189
      %p192 = scmp.ne.s32.totalorder %s175, %s191
      %p193 = scmp.eq.s32.totalorder %s27, 0
      %p194 = por %p192, %p193
      %p195 = scmp.le.s32.totalorder 1, %s21
      %p196 = scmp.lt.s32.totalorder %s21, 3
      %p197 = pnand %p195, %p196
      %p198 = pneg %p197
      // Predicated region
      $region9: #{tpu_custom_call.1} parent=5 // pred_check
        _
      $region10: #{tpu_custom_call.1} parent=5 // pred_check_branch
        %200 = sbr.rel (%p197) target = $region12
      $region11: #{tpu_custom_call.1} parent=5 // pred_region
        %s201 = ssub.s32 %s21, 1
        // Predicated region
        $region13: #{tpu_custom_call.1} parent=11 // pred_check
          %p202 = pneg %p117
        $region14: #{tpu_custom_call.1} parent=11 // pred_check_branch
          %204 = sbr.rel (%p202) target = $region16
        $region15: #{tpu_custom_call.1} parent=11 // pred_region
          %206 = vsyncadd [#allocation8], 0
          %s207 = sshll.u32 %s2, 4
          %s208 = int_to_ptr.hbm [resolvable:$true] %s207
          %s209 = sshll.u32 [#allocation9], 4
          %s210 = int_to_ptr.vmem [resolvable:$true] %s209
          %215 = dma.hbm_to_vmem [thread:$0]  %s208, 1024, %s210, [#allocation8], 64, 64, 4
        $region16: #{tpu_custom_call.1} parent=11 // pred_fallthru
          _
        // Predicated region
        $region17: #{tpu_custom_call.1} parent=11 // pred_check
          %p216 = pneg %p138
        $region18: #{tpu_custom_call.1} parent=11 // pred_check_branch
          %218 = sbr.rel (%p216) target = $region20
        $region19: #{tpu_custom_call.1} parent=11 // pred_region
          _
        $region20: #{tpu_custom_call.1} parent=11 // pred_fallthru
          _
        // Predicated region
        $region21: #{tpu_custom_call.1} parent=11 // pred_check
          %p219 = pneg %p159
        $region22: #{tpu_custom_call.1} parent=11 // pred_check_branch
          %221 = sbr.rel (%p219) target = $region24
        $region23: #{tpu_custom_call.1} parent=11 // pred_region
          _
        $region24: #{tpu_custom_call.1} parent=11 // pred_fallthru
          _
      $region12: #{tpu_custom_call.1} parent=5 // pred_fallthru
        _
      %p222 = scmp.lt.s32.totalorder %s21, 2
      // Predicated region
      $region25: #{tpu_custom_call.1} parent=5 // pred_check
        %p223 = pneg %p222
      $region26: #{tpu_custom_call.1} parent=5 // pred_check_branch
        %225 = sbr.rel (%p223) target = $region28
      $region27: #{tpu_custom_call.1} parent=5 // pred_region
        // Predicated region
        $region29: #{tpu_custom_call.1} parent=27 // pred_check
          %p226 = pneg %p60
        $region30: #{tpu_custom_call.1} parent=27 // pred_check_branch
          %228 = sbr.rel (%p226) target = $region32
        $region31: #{tpu_custom_call.1} parent=27 // pred_region
          %s229 = sand.u32 %s50, 1
          %s230 = scalar_lea.sflag [#allocation5], %s229
          %s231 = sand.u32 %s50, 1
          %s232 = smul.addr %s231, 64
          %s233 = scalar_lea.vmem [#allocation4], %s232
          %235 = vsyncadd %s230, 0
          %s236 = smul.addr %s28, 16
          %s237 = smul.addr %s236, 4
          %s238 = scalar_lea.hbm %s0, %s237
          %s239 = sshll.u32 %s238, 4
          %s240 = int_to_ptr.hbm [resolvable:$true] %s239
          %s241 = sshll.u32 %s233, 4
          %s242 = int_to_ptr.vmem [resolvable:$true] %s241
          %247 = dma.hbm_to_vmem [thread:$0]  %s240, 1024, %s242, %s230, 64, 64, 4
        $region32: #{tpu_custom_call.1} parent=27 // pred_fallthru
          _
        // Predicated region
        $region33: #{tpu_custom_call.1} parent=27 // pred_check
          %p248 = pneg %p90
        $region34: #{tpu_custom_call.1} parent=27 // pred_check_branch
          %250 = sbr.rel (%p248) target = $region36
        $region35: #{tpu_custom_call.1} parent=27 // pred_region
          %s251 = sand.u32 %s21, 1
          %s252 = scalar_lea.sflag [#allocation8], %s251
          %s253 = sand.u32 %s80, 1
          %s254 = smul.addr %s253, 8
          %s255 = scalar_lea.vmem [#allocation7], %s254
          %s256 = smul.u32 2, %s29
          %258 = vsyncadd %s252, 0
          %s259 = sadd.s32 %s30, %s256
          %s260 = smul.addr %s28, 2
          %s261 = sadd.s32 %s259, %s260
          %s262 = smul.addr %s261, 4
          %s263 = scalar_lea.hbm %s1, %s262
          %s264 = sshll.u32 %s263, 4
          %s265 = int_to_ptr.hbm [resolvable:$true] %s264
          %s266 = sshll.u32 %s255, 4
          %s267 = int_to_ptr.vmem [resolvable:$true] %s266
          %272 = dma.hbm_to_vmem [thread:$0]  %s265, 128, %s267, %s252, 64, 64, 4
        $region36: #{tpu_custom_call.1} parent=27 // pred_fallthru
          _
      $region28: #{tpu_custom_call.1} parent=5 // pred_fallthru
        _
      %p273 = scmp.le.s32.totalorder 1, %s21
      %p274 = scmp.lt.s32.totalorder %s21, 3
      %p275 = pnand %p273, %p274
      %p276 = pneg %p275
      // Predicated region
      $region37: #{tpu_custom_call.1} parent=5 // pred_check
        _
      $region38: #{tpu_custom_call.1} parent=5 // pred_check_branch
        %278 = sbr.rel (%p275) target = $region40
      $region39: #{tpu_custom_call.1} parent=5 // pred_region
        %s279 = ssub.s32 %s21, 1
        %s280 = sand.u32 %s53, 1
        %s281 = scalar_lea.sflag [#allocation5], %s280
        %s282 = sand.u32 %s53, 1
        %s283 = smul.addr %s282, 64
        %s284 = scalar_lea.vmem [#allocation4], %s283
        // Predicated region
        $region41: #{tpu_custom_call.1} parent=39 // pred_check
          %p285 = pneg %p66
        $region42: #{tpu_custom_call.1} parent=39 // pred_check_branch
          %287 = sbr.rel (%p285) target = $region44
        $region43: #{tpu_custom_call.1} parent=39 // pred_region
          %289 = dma.done %s281, 1024
        $region44: #{tpu_custom_call.1} parent=39 // pred_fallthru
          _
        %s290 = sand.u32 %s26, 1
        %s291 = scalar_lea.sflag [#allocation8], %s290
        %s292 = sand.u32 %s83, 1
        %s293 = smul.addr %s292, 8
        %s294 = scalar_lea.vmem [#allocation7], %s293
        // Predicated region
        $region45: #{tpu_custom_call.1} parent=39 // pred_check
          %p295 = pneg %p96
        $region46: #{tpu_custom_call.1} parent=39 // pred_check_branch
          %297 = sbr.rel (%p295) target = $region48
        $region47: #{tpu_custom_call.1} parent=39 // pred_region
          %299 = dma.done %s291, 128
        $region48: #{tpu_custom_call.1} parent=39 // pred_fallthru
          _
        // Predicated region
        $region49: #{tpu_custom_call.1} parent=39 // pred_check
          %p300 = pneg %p117
        $region50: #{tpu_custom_call.1} parent=39 // pred_check_branch
          %302 = sbr.rel (%p300) target = $region52
        $region51: #{tpu_custom_call.1} parent=39 // pred_region
          %304 = dma.done [#allocation8], 1024
        $region52: #{tpu_custom_call.1} parent=39 // pred_fallthru
          _
        %s305 = sand.u32 %s53, 1
        %s306 = scalar_lea.sflag [#allocation5], %s305
        %s307 = sand.u32 %s53, 1
        %s308 = smul.addr %s307, 64
        %s309 = scalar_lea.vmem [#allocation4], %s308
        %p310 = pneg %p66
        %p311 = pneg %p63
        %s312 = sand.u32 %s26, 1
        %s313 = scalar_lea.sflag [#allocation8], %s312
        %s314 = sand.u32 %s83, 1
        %s315 = smul.addr %s314, 8
        %s316 = scalar_lea.vmem [#allocation7], %s315
        %p317 = pneg %p96
        %p318 = pneg %p93
        %p319 = pneg %p117
        %p320 = pneg %p114
        %p321 = pneg %p138
        %p322 = pneg %p135
        %p323 = pneg %p159
        %p324 = pneg %p156
        %p325 = pneg %p187
        %p326 = pneg %p184
        %s327 = sand.u32 %s174, 1
        %s328 = scalar_lea.sflag [#allocation6], %s327
        %s329 = sand.u32 %s174, 1
        %s330 = smul.addr %s329, 16
        %s331 = scalar_lea.vmem [#allocation10], %s330
        %s332 = smul.u32 2, %s32
        %s333 = smul.u32 2, %s32
        %s334 = smul.u32 %s33, 128
        %s335 = sshra.s32 %s334, 3
        %s336 = sand.u32 %s334, 7
        %s337 = smul.addr %s335, 4
        %s338 = scalar_lea.vmem %s284, %s337 [#allocation4]
        %v339 = vld [vmem:[%s338] sm:$0xf]
        %v340 = vld [vmem:[%s338 + $0x4] sm:$0xf]
        %v341 = vld [vmem:[%s338 + $0x8] sm:$0xf]
        %v342 = vld [vmem:[%s338 + $0xc] sm:$0xf]
        %v343 = vld [vmem:[%s338 + $0x10] sm:$0xf]
        %v344 = vld [vmem:[%s338 + $0x14] sm:$0xf]
        %v345 = vld [vmem:[%s338 + $0x18] sm:$0xf]
        %v346 = vld [vmem:[%s338 + $0x1c] sm:$0xf]
        %v347 = vld [vmem:[%s338 + $0x20] sm:$0xf]
        %v348 = vld [vmem:[%s338 + $0x24] sm:$0xf]
        %v349 = vld [vmem:[%s338 + $0x28] sm:$0xf]
        %v350 = vld [vmem:[%s338 + $0x2c] sm:$0xf]
        %v351 = vld [vmem:[%s338 + $0x30] sm:$0xf]
        %v352 = vld [vmem:[%s338 + $0x34] sm:$0xf]
        %v353 = vld [vmem:[%s338 + $0x38] sm:$0xf]
        %v354 = vld [vmem:[%s338 + $0x3c] sm:$0xf]
        %v355 = vld [vmem:[%s294] sm:$0xf]
        %v356 = vld [vmem:[%s294 + $0x4] sm:$0xf]
        %v359 = vunpack.c.l.b16 %v355
        %v360 = vunpack.c.l.b16 %v356
        %v361 = vpack.c.b16 %v360, %v359
        %v379 = vunpack.c.l.b16 %v339
        %v380 = vunpack.c.l.b16 %v340
        %v381 = vunpack.c.l.b16 %v341
        %v382 = vunpack.c.l.b16 %v342
        %v383 = vunpack.c.l.b16 %v343
        %v384 = vunpack.c.l.b16 %v344
        %v385 = vunpack.c.l.b16 %v345
        %v386 = vunpack.c.l.b16 %v346
        %v387 = vunpack.c.l.b16 %v347
        %v388 = vunpack.c.l.b16 %v348
        %v389 = vunpack.c.l.b16 %v349
        %v390 = vunpack.c.l.b16 %v350
        %v391 = vunpack.c.l.b16 %v351
        %v392 = vunpack.c.l.b16 %v352
        %v393 = vunpack.c.l.b16 %v353
        %v394 = vunpack.c.l.b16 %v354
        %v395 = vpack.c.b16 %v380, %v379
        %v396 = vpack.c.b16 %v382, %v381
        %v397 = vpack.c.b16 %v384, %v383
        %v398 = vpack.c.b16 %v386, %v385
        %v399 = vpack.c.b16 %v388, %v387
        %v400 = vpack.c.b16 %v390, %v389
        %v401 = vpack.c.b16 %v392, %v391
        %v402 = vpack.c.b16 %v394, %v393
        %411 = vmatpush.bf16.msra.mxu0 %v402
        %412 = vmatpush.bf16.msra.mxu0 %v401
        %413 = vmatpush.bf16.msra.mxu0 %v400
        %414 = vmatpush.bf16.msra.mxu0 %v399
        %415 = vmatpush.bf16.msra.mxu0 %v398
        %416 = vmatpush.bf16.msra.mxu0 %v397
        %417 = vmatpush.bf16.msra.mxu0 %v396
        %418 = vmatpush.bf16.msra.mxu0 %v395
        %419 = vmatmul.bf16.gmra.mxu0 %v361
        %v420 = vpop.f32.mrf.mxu0
        %v421 = vadd.f32 0.0, %v420
        %v422 = vpop.f32.mrf.mxu0
        %v423 = vadd.f32 0.0, %v422
        %424 = vdwg.mxu0
        %p425 = scmp.eq.s32.totalorder %s33, 0
        // Predicated region
        $region53: #{tpu_custom_call.1} parent=39 // pred_check
          %p426 = pneg %p425
        $region54: #{tpu_custom_call.1} parent=39 // pred_check_branch
          %428 = sbr.rel (%p426) target = $region56
        $region55: #{tpu_custom_call.1} parent=39 // pred_region
          %429 = vst [vmem:[#allocation2] sm:$0xff] %v421
          %430 = vst [vmem:[#allocation2 + $0x8] sm:$0xff] %v423
        $region56: #{tpu_custom_call.1} parent=39 // pred_fallthru
          _
        %p431 = scmp.gt.s32.totalorder %s33, 0
        // Predicated region
        $region57: #{tpu_custom_call.1} parent=39 // pred_check
          %p432 = pneg %p431
        $region58: #{tpu_custom_call.1} parent=39 // pred_check_branch
          %434 = sbr.rel (%p432) target = $region60
        $region59: #{tpu_custom_call.1} parent=39 // pred_region
          %v435 = vld [vmem:[#allocation2] sm:$0xff]
          %v436 = vld [vmem:[#allocation2 + $0x8] sm:$0xff]
          %v437 = vadd.f32 %v435, %v421
          %v438 = vadd.f32 %v436, %v423
          %439 = vst [vmem:[#allocation2] sm:$0xff] %v437
          %440 = vst [vmem:[#allocation2 + $0x8] sm:$0xff] %v438
        $region60: #{tpu_custom_call.1} parent=39 // pred_fallthru
          _
        // Predicated region
        $region61: #{tpu_custom_call.1} parent=39 // pred_check
          %p441 = pneg %p425
        $region62: #{tpu_custom_call.1} parent=39 // pred_check_branch
          %443 = sbr.rel (%p441) target = $region64
        $region63: #{tpu_custom_call.1} parent=39 // pred_region
          %v444 = vld [vmem:[#allocation2] sm:$0xff]
          %v445 = vld [vmem:[#allocation2 + $0x8] sm:$0xff]
          %v446 = vpack.c.bf16 %v445, %v444
          %v447 = vld [vmem:[#allocation9] sm:$0xf]
          %v448 = vld [vmem:[#allocation9 + $0x4] sm:$0xf]
          %v449 = vld [vmem:[#allocation9 + $0x8] sm:$0xf]
          %v450 = vld [vmem:[#allocation9 + $0xc] sm:$0xf]
          %v451 = vld [vmem:[#allocation9 + $0x10] sm:$0xf]
          %v452 = vld [vmem:[#allocation9 + $0x14] sm:$0xf]
          %v453 = vld [vmem:[#allocation9 + $0x18] sm:$0xf]
          %v454 = vld [vmem:[#allocation9 + $0x1c] sm:$0xf]
          %v455 = vld [vmem:[#allocation9 + $0x20] sm:$0xf]
          %v456 = vld [vmem:[#allocation9 + $0x24] sm:$0xf]
          %v457 = vld [vmem:[#allocation9 + $0x28] sm:$0xf]
          %v458 = vld [vmem:[#allocation9 + $0x2c] sm:$0xf]
          %v459 = vld [vmem:[#allocation9 + $0x30] sm:$0xf]
          %v460 = vld [vmem:[#allocation9 + $0x34] sm:$0xf]
          %v461 = vld [vmem:[#allocation9 + $0x38] sm:$0xf]
          %v462 = vld [vmem:[#allocation9 + $0x3c] sm:$0xf]
          %v463 = vld [vmem:[%s3] sm:$0x1]
          %v465 = vperm.slane %v463, 0
          %v483 = vunpack.c.l.b16 %v447
          %v484 = vunpack.c.l.b16 %v448
          %v485 = vunpack.c.l.b16 %v449
          %v486 = vunpack.c.l.b16 %v450
          %v487 = vunpack.c.l.b16 %v451
          %v488 = vunpack.c.l.b16 %v452
          %v489 = vunpack.c.l.b16 %v453
          %v490 = vunpack.c.l.b16 %v454
          %v491 = vunpack.c.l.b16 %v455
          %v492 = vunpack.c.l.b16 %v456
          %v493 = vunpack.c.l.b16 %v457
          %v494 = vunpack.c.l.b16 %v458
          %v495 = vunpack.c.l.b16 %v459
          %v496 = vunpack.c.l.b16 %v460
          %v497 = vunpack.c.l.b16 %v461
          %v498 = vunpack.c.l.b16 %v462
          %v499 = vpack.c.b16 %v484, %v483
          %v500 = vpack.c.b16 %v486, %v485
          %v501 = vpack.c.b16 %v488, %v487
          %v502 = vpack.c.b16 %v490, %v489
          %v503 = vpack.c.b16 %v492, %v491
          %v504 = vpack.c.b16 %v494, %v493
          %v505 = vpack.c.b16 %v496, %v495
          %v506 = vpack.c.b16 %v498, %v497
          %515 = vmatpush.bf16.msra.mxu0 %v506
          %516 = vmatpush.bf16.msra.mxu0 %v505
          %517 = vmatpush.bf16.msra.mxu0 %v504
          %518 = vmatpush.bf16.msra.mxu0 %v503
          %519 = vmatpush.bf16.msra.mxu0 %v502
          %520 = vmatpush.bf16.msra.mxu0 %v501
          %521 = vmatpush.bf16.msra.mxu0 %v500
          %522 = vmatpush.bf16.msra.mxu0 %v499
          %523 = vmatmul.bf16.gmra.mxu0 %v446
          %v524 = vpop.f32.mrf.mxu0
          %v525 = vadd.f32 %v465, %v524
          %v526 = vpop.f32.mrf.mxu0
          %v527 = vadd.f32 %v465, %v526
          %528 = vdwg.mxu0
          %s529 = sld [smem:[#allocation3]]
          %vm530 = vcmp.ge.f32.partialorder %v525, 0.0
          %vm531 = vcmp.ge.f32.partialorder %v527, 0.0
          %v532 = vstv %s529
          %v533 = vmul.f32 %v532, %v525
          %v534 = vmul.f32 %v532, %v527
          %v535 = vsel %vm530, %v525, %v533
          %v536 = vsel %vm531, %v527, %v534
          %537 = vst [vmem:[%s331] sm:$0xff] %v535
          %538 = vst [vmem:[%s331 + $0x8] sm:$0xff] %v536
        $region64: #{tpu_custom_call.1} parent=39 // pred_fallthru
          _
        %s539 = sand.u32 %s174, 1
        %s540 = scalar_lea.sflag [#allocation6], %s539
        %s541 = sand.u32 %s174, 1
        %s542 = smul.addr %s541, 16
        %s543 = scalar_lea.vmem [#allocation10], %s542
        // Predicated region
        $region65: #{tpu_custom_call.1} parent=39 // pred_check
          %p544 = pneg %p184
        $region66: #{tpu_custom_call.1} parent=39 // pred_check_branch
          %546 = sbr.rel (%p544) target = $region68
        $region67: #{tpu_custom_call.1} parent=39 // pred_region
          %s547 = smul.u32 2, %s32
          %549 = vsyncadd %s540, 0
          %s550 = smul.addr %s31, 2
          %s551 = sadd.s32 %s547, %s550
          %s552 = smul.addr %s551, 8
          %s553 = scalar_lea.hbm %s5, %s552
          %s554 = sshll.u32 %s543, 4
          %s555 = int_to_ptr.vmem [resolvable:$true] %s554
          %s556 = sshll.u32 %s553, 4
          %s557 = int_to_ptr.hbm [resolvable:$true] %s556
          %562 = dma.vmem_to_hbm [thread:$0]  %s555, 256, %s557, %s540, 128, 128, 8
        $region68: #{tpu_custom_call.1} parent=39 // pred_fallthru
          _
      $region40: #{tpu_custom_call.1} parent=5 // pred_fallthru
        _
      %p563 = scmp.le.s32.totalorder 2, %s21
      // Predicated region
      $region69: #{tpu_custom_call.1} parent=5 // pred_check
        %p564 = pneg %p563
      $region70: #{tpu_custom_call.1} parent=5 // pred_check_branch
        %566 = sbr.rel (%p564) target = $region72
      $region71: #{tpu_custom_call.1} parent=5 // pred_region
        %s567 = ssub.s32 %s21, 2
        // Predicated region
        $region73: #{tpu_custom_call.1} parent=71 // pred_check
          %p568 = pneg %p190
        $region74: #{tpu_custom_call.1} parent=71 // pred_check_branch
          %570 = sbr.rel (%p568) target = $region76
        $region75: #{tpu_custom_call.1} parent=71 // pred_region
          %s571 = sand.u32 %s175, 1
          %s572 = scalar_lea.sflag [#allocation6], %s571
          %s573 = sand.u32 %s175, 1
          %s574 = smul.addr %s573, 16
          %s575 = scalar_lea.vmem [#allocation10], %s574
          %577 = dma.done %s572, 256
        $region76: #{tpu_custom_call.1} parent=71 // pred_fallthru
          _
      $region72: #{tpu_custom_call.1} parent=5 // pred_fallthru
        _
    $region6: #{tpu_custom_call.1} parent=1 // loop_footer
      %s25 = sadd.s32 1, %s21
    $region7: #{tpu_custom_call.1} parent=1 // loop_footer_branch
      %20 = sbr.rel target = $region3
    $region8: #{tpu_custom_call.1} parent=1 // loop_exit
      _
    %578 = vsyncpa [#allocation5], 1
    %s579 = scalar_lea.sflag [#allocation5], 1
    %580 = vsyncpa %s579, 1
    %581 = vsyncpa [#allocation8], 1
    %s582 = scalar_lea.sflag [#allocation8], 1
    %583 = vsyncpa %s582, 1
    %584 = vsyncpa [#allocation6], 1
    %s585 = scalar_lea.sflag [#allocation6], 1
    %586 = vsyncpa %s585, 1

</llo_original>
